<compile_context>
chip_gen: v7x
topology: tpu7x:2x2x1
jax: 0.10.0
libtpu: 0.0.40
codegen_flags: <defaults>
</compile_context>

<pallas_src>
import numpy as np
import jax
import jax.numpy as jnp
from jax.experimental import pallas as pl
from jax.experimental.pallas import tpu as pltpu

CONF, X, Y, W, H = 0, 1, 2, 3, 4
LAMBDA_COORD = 5.0
LAMBDA_NOOBJ = 0.5


def _device_kind():
    try:
        return jax.devices()[0].device_kind.lower()
    except Exception:
        return ""


def _yolo_loss_kernel(pred_ref, targ_ref, out_ref):
    """pred_ref / targ_ref: (5, r_tile, 128) f32 VMEM blocks, channels (conf,x,y,w,h).

    out_ref: (40, 128) f32 accumulator, resident across the reduction axis.
    Rows [8k, 8k+8) hold lane/sublane-wise partial sums of quantity k:
      k=0: (1 - iou) over obj cells     k=1: obj-cell count
      k=2: BCE(conf) over obj cells     k=3: no-obj-cell count
      k=4: BCE(conf) over no-obj cells
    """
    @pl.when(pl.program_id(1) == 0)
    def _():
        out_ref[...] = jnp.zeros_like(out_ref)

    p_conf = pred_ref[CONF]                  # (r_tile, 128)
    t_conf = targ_ref[CONF]
    obj = t_conf > 0.0                       # padded lanes carry t_conf = -1 -> neither mask
    noobj = t_conf == 0.0

    # ---- bbox IoU over (x, y, w, h) ----
    px, py, pw, ph = pred_ref[X], pred_ref[Y], pred_ref[W], pred_ref[H]
    tx, ty, tw, th = targ_ref[X], targ_ref[Y], targ_ref[W], targ_ref[H]
    phw, phh = pw * 0.5, ph * 0.5            # hoisted half-extents
    thw, thh = tw * 0.5, th * 0.5
    inter_w = jnp.maximum(jnp.minimum(px + phw, tx + thw) -
                          jnp.maximum(px - phw, tx - thw), 0.0)
    inter_h = jnp.maximum(jnp.minimum(py + phh, ty + thh) -
                          jnp.maximum(py - phh, ty - thh), 0.0)
    inter = inter_w * inter_h
    union = jnp.maximum(pw * ph + tw * th - inter, 1e-6)
    # approx reciprocal (EUP) + one Newton step (VPU) instead of a full divide.
    r = pl.reciprocal(union, approx=True)
    r = r * (2.0 - union * r)
    iou = inter * r

    # ---- BCE on confidence (sum reduction, PyTorch-style log clamp at -100) ----
    # Two-log form kept so fractional target confidences stay exact (matches nn.BCELoss).
    log_p = jnp.maximum(jnp.log(p_conf), -100.0)
    log_1mp = jnp.maximum(jnp.log(1.0 - p_conf), -100.0)
    bce = -(t_conf * log_p + (1.0 - t_conf) * log_1mp)

    zero = jnp.zeros_like(iou)
    r_tile = iou.shape[0]

    def blocksum(x):
        # (r_tile, 128) -> (8, 128): sublane-group sums, pure VPU vadds (no XLU).
        return jnp.sum(x.reshape(r_tile // 8, 8, 128), axis=0)

    upd = jnp.concatenate(
        [blocksum(jnp.where(obj, 1.0 - iou, zero)),
         blocksum(obj.astype(jnp.float32)),
         blocksum(jnp.where(obj, bce, zero)),
         blocksum(noobj.astype(jnp.float32)),
         blocksum(jnp.where(noobj, bce, zero))], axis=0)
    out_ref[...] += upd                      # single full-vreg accumulator update


def yolo_face_loss(pred, target, lambda_coord=LAMBDA_COORD, lambda_noobj=LAMBDA_NOOBJ):
    """pred, target: (B, S, S, 5) float32, channel order (conf, x, y, w, h)."""
    B, S1, S2, C = pred.shape
    assert C == 5
    n = B * S1 * S2

    # Generation-aware tuning: v7x has 2 TCs but only 64 MiB VMEM/TC.
    kind = _device_kind()
    is_v7 = ("v7" in kind) or ("7x" in kind)
    max_r_tile = 1024 if is_v7 else 2048
    vmem_limit = (40 if is_v7 else 64) * 1024 * 1024
    n_cores = 2 if is_v7 else 1

    rows = pl.cdiv(n, 128)                          # cells packed 128 per sublane-row
    r_tile = min(max_r_tile, -(-rows // 8) * 8)     # multiple of 8 sublanes
    steps = -(-rows // r_tile)

    # Only split across TensorCores when each core gets >= 2 tiles (avoids a
    # pure-padding tile on one core plus a duplicate accumulator writeback).
    num_splits = 1
    if n_cores >= 2 and steps >= 4:
        num_splits = 2
        steps = -(-steps // num_splits) * num_splits
    steps_per_split = steps // num_splits

    rpad = steps * r_tile
    n_pad = rpad * 128

    # Pad cells BEFORE the channel transpose so pad + transpose fuse into one
    # HBM copy.  Target pad cells get -1 (conf = -1 matches neither mask; box
    # values are irrelevant because every use is where-masked).
    pred2 = jnp.pad(pred.astype(jnp.float32).reshape(n, 5),
                    ((0, n_pad - n), (0, 0)), constant_values=0.0)
    targ2 = jnp.pad(target.astype(jnp.float32).reshape(n, 5),
                    ((0, n_pad - n), (0, 0)), constant_values=-1.0)
    pred_p = pred2.T.reshape(5, rpad, 128)          # channel-major, lane/sublane-dense
    targ_p = targ2.T.reshape(5, rpad, 128)

    def in_map(c, i):
        return (0, c * steps_per_split + i, 0)

    acc = pl.pallas_call(
        _yolo_loss_kernel,
        out_shape=jax.ShapeDtypeStruct((num_splits, 40, 128), jnp.float32),
        grid=(num_splits, steps_per_split),
        in_specs=[pl.BlockSpec((5, r_tile, 128), in_map),
                  pl.BlockSpec((5, r_tile, 128), in_map)],
        out_specs=pl.BlockSpec((None, 40, 128), lambda c, i: (c, 0, 0)),
        compiler_params=pltpu.CompilerParams(
            dimension_semantics=("parallel", "arbitrary"),
            vmem_limit_bytes=vmem_limit),
    )(pred_p, targ_p)

    # Tiny final reduction + divides in plain JAX.
    sums = jnp.sum(acc.reshape(num_splits, 5, 8, 128), axis=(0, 2, 3))   # (5,)
    s_1miou, n_obj, s_bce_obj, n_noobj, s_bce_noobj = (sums[i] for i in range(5))

    has_obj = n_obj > 0
    has_noobj = n_noobj > 0
    iou_loss = jnp.where(has_obj,
                         lambda_coord * s_1miou / jnp.maximum(n_obj, 1.0), 0.0)
    obj_loss = jnp.where(has_obj, s_bce_obj, 0.0)
    no_obj_loss = jnp.where(has_noobj,
                            lambda_noobj * s_bce_noobj / jnp.maximum(n_noobj, 1.0), 0.0)
    total = iou_loss + obj_loss + no_obj_loss
    return total, iou_loss, obj_loss, no_obj_loss


# ---------------- pure-JAX reference (mirrors the PyTorch module) ----------------
def _bbox_iou_ref(b1, b2):
    b1x1, b1y1 = b1[..., 0] - b1[..., 2] / 2, b1[..., 1] - b1[..., 3] / 2
    b1x2, b1y2 = b1[..., 0] + b1[..., 2] / 2, b1[..., 1] + b1[..., 3] / 2
    b2x1, b2y1 = b2[..., 0] - b2[..., 2] / 2, b2[..., 1] - b2[..., 3] / 2
    b2x2, b2y2 = b2[..., 0] + b2[..., 2] / 2, b2[..., 1] + b2[..., 3] / 2
    inter = jnp.clip(jnp.minimum(b1x2, b2x2) - jnp.maximum(b1x1, b2x1), 0) * \
            jnp.clip(jnp.minimum(b1y2, b2y2) - jnp.maximum(b1y1, b2y1), 0)
    union = (b1x2 - b1x1) * (b1y2 - b1y1) + (b2x2 - b2x1) * (b2y2 - b2y1) - inter
    return inter / jnp.maximum(union, 1e-6)


def yolo_face_loss_ref(pred, target, lambda_coord=LAMBDA_COORD, lambda_noobj=LAMBDA_NOOBJ):
    t_conf = target[..., 0]
    p_conf = pred[..., 0]
    obj = t_conf > 0
    noobj = t_conf == 0
    n_obj = jnp.sum(obj.astype(jnp.float32))
    n_noobj = jnp.sum(noobj.astype(jnp.float32))

    iou = _bbox_iou_ref(pred[..., 1:5], target[..., 1:5])
    iou_loss = jnp.where(n_obj > 0,
                         lambda_coord * jnp.sum(jnp.where(obj, 1 - iou, 0.0)) /
                         jnp.maximum(n_obj, 1.0), 0.0)

    bce = -(t_conf * jnp.maximum(jnp.log(p_conf), -100.0) +
            (1 - t_conf) * jnp.maximum(jnp.log(1 - p_conf), -100.0))
    obj_loss = jnp.where(n_obj > 0, jnp.sum(jnp.where(obj, bce, 0.0)), 0.0)
    no_obj_loss = jnp.where(n_noobj > 0,
                            lambda_noobj * jnp.sum(jnp.where(noobj, bce, 0.0)) /
                            jnp.maximum(n_noobj, 1.0), 0.0)
    total = iou_loss + obj_loss + no_obj_loss
    return total, iou_loss, obj_loss, no_obj_loss


if __name__ == "__main__":
    key = jax.random.PRNGKey(0)
    B, S = 2, 16
    k1, k2, k3 = jax.random.split(key, 3)

    # predictions: confidences & boxes squashed into (0, 1) (YOLO-v1 style outputs)
    pred = jax.nn.sigmoid(jax.random.normal(k1, (B, S, S, 5), jnp.float32))

    # targets: ~30% of cells contain a face (conf = 1), boxes in (0, 1)
    conf = (jax.random.uniform(k2, (B, S, S)) > 0.7).astype(jnp.float32)
    boxes = jax.random.uniform(k3, (B, S, S, 4), jnp.float32) * conf[..., None]
    target = jnp.concatenate([conf[..., None], boxes], axis=-1)

    total, iou_l, obj_l, noobj_l = jax.block_until_ready(yolo_face_loss(pred, target))
    ref_total, ref_iou, ref_obj, ref_noobj = yolo_face_loss_ref(pred, target)

    np.testing.assert_allclose(np.asarray(total), np.asarray(ref_total), rtol=1e-4, atol=1e-4)
    np.testing.assert_allclose(np.asarray(iou_l), np.asarray(ref_iou), rtol=1e-4, atol=1e-4)
    np.testing.assert_allclose(np.asarray(obj_l), np.asarray(ref_obj), rtol=1e-4, atol=1e-4)
    np.testing.assert_allclose(np.asarray(noobj_l), np.asarray(ref_noobj), rtol=1e-4, atol=1e-4)

    print("KERNEL_OK")
</pallas_src>

<mosaic_0001>
module attributes {stable_mosaic.version = 11 : i64} {
  func.func @_yolo_loss_kernel(%arg0: i32, %arg1: i32, %arg2: memref<5x8x128xf32, #tpu.memory_space<vmem>>, %arg3: memref<5x8x128xf32, #tpu.memory_space<vmem>>, %arg4: memref<1x40x128xf32, #tpu.memory_space<vmem>>) attributes {dimension_semantics = [#tpu.dimension_semantics<parallel>, #tpu.dimension_semantics<arbitrary>], iteration_bounds = array<i64: 1, 1>, scalar_prefetch = 0 : i64, scratch_operands = 0 : i64, tpu.core_type = #tpu.core_type<tc>, window_params = [{transform_indices = @transform_0, window_bounds = array<i64: 5, 8, 128>}, {transform_indices = @transform_1, window_bounds = array<i64: 5, 8, 128>}, {transform_indices = @transform_2, window_bounds = array<i64: 1, 40, 128>}]} {
    %c0_i32 = arith.constant 0 : i32
    %0 = arith.cmpi eq, %arg1, %c0_i32 : i32
    %1 = arith.extui %0 : i1 to i32
    %c0_i32_0 = arith.constant 0 : i32
    %2 = arith.cmpi ne, %1, %c0_i32_0 : i32
    scf.if %2 {
      %cst_53 = arith.constant 0.000000e+00 : f32
      %108 = vector.broadcast %cst_53 : f32 to vector<40x128xf32>
      %c0_54 = arith.constant 0 : index
      %c0_55 = arith.constant 0 : index
      %c0_56 = arith.constant 0 : index
      %109 = vector.load %arg4[%c0_54, %c0_55, %c0_56] : memref<1x40x128xf32, #tpu.memory_space<vmem>>, vector<1x40x128xf32>
      %110 = vector.shape_cast %109 : vector<1x40x128xf32> to vector<40x128xf32>
      %111 = vector.shape_cast %108 : vector<40x128xf32> to vector<1x40x128xf32>
      tpu.vector_store %arg4[%c0_54, %c0_55, %c0_56], %111 {strides = array<i32>} : memref<1x40x128xf32, #tpu.memory_space<vmem>>, vector<1x40x128xf32>,
    } else {
    }
    %c0 = arith.constant 0 : index
    %c0_1 = arith.constant 0 : index
    %c0_2 = arith.constant 0 : index
    %3 = vector.load %arg2[%c0, %c0_1, %c0_2] : memref<5x8x128xf32, #tpu.memory_space<vmem>>, vector<1x8x128xf32>
    %4 = vector.shape_cast %3 : vector<1x8x128xf32> to vector<8x128xf32>
    %c0_3 = arith.constant 0 : index
    %c0_4 = arith.constant 0 : index
    %c0_5 = arith.constant 0 : index
    %5 = vector.load %arg3[%c0_3, %c0_4, %c0_5] : memref<5x8x128xf32, #tpu.memory_space<vmem>>, vector<1x8x128xf32>
    %6 = vector.shape_cast %5 : vector<1x8x128xf32> to vector<8x128xf32>
    %cst = arith.constant 0.000000e+00 : f32
    %7 = vector.broadcast %cst : f32 to vector<8x128xf32>
    %8 = arith.cmpf ogt, %6, %7 : vector<8x128xf32>
    %cst_6 = arith.constant 0.000000e+00 : f32
    %9 = vector.broadcast %cst_6 : f32 to vector<8x128xf32>
    %10 = arith.cmpf oeq, %6, %9 : vector<8x128xf32>
    %c1 = arith.constant 1 : index
    %c0_7 = arith.constant 0 : index
    %c0_8 = arith.constant 0 : index
    %11 = vector.load %arg2[%c1, %c0_7, %c0_8] : memref<5x8x128xf32, #tpu.memory_space<vmem>>, vector<1x8x128xf32>
    %12 = vector.shape_cast %11 : vector<1x8x128xf32> to vector<8x128xf32>
    %c2 = arith.constant 2 : index
    %c0_9 = arith.constant 0 : index
    %c0_10 = arith.constant 0 : index
    %13 = vector.load %arg2[%c2, %c0_9, %c0_10] : memref<5x8x128xf32, #tpu.memory_space<vmem>>, vector<1x8x128xf32>
    %14 = vector.shape_cast %13 : vector<1x8x128xf32> to vector<8x128xf32>
    %c3 = arith.constant 3 : index
    %c0_11 = arith.constant 0 : index
    %c0_12 = arith.constant 0 : index
    %15 = vector.load %arg2[%c3, %c0_11, %c0_12] : memref<5x8x128xf32, #tpu.memory_space<vmem>>, vector<1x8x128xf32>
    %16 = vector.shape_cast %15 : vector<1x8x128xf32> to vector<8x128xf32>
    %c4 = arith.constant 4 : index
    %c0_13 = arith.constant 0 : index
    %c0_14 = arith.constant 0 : index
    %17 = vector.load %arg2[%c4, %c0_13, %c0_14] : memref<5x8x128xf32, #tpu.memory_space<vmem>>, vector<1x8x128xf32>
    %18 = vector.shape_cast %17 : vector<1x8x128xf32> to vector<8x128xf32>
    %c1_15 = arith.constant 1 : index
    %c0_16 = arith.constant 0 : index
    %c0_17 = arith.constant 0 : index
    %19 = vector.load %arg3[%c1_15, %c0_16, %c0_17] : memref<5x8x128xf32, #tpu.memory_space<vmem>>, vector<1x8x128xf32>
    %20 = vector.shape_cast %19 : vector<1x8x128xf32> to vector<8x128xf32>
    %c2_18 = arith.constant 2 : index
    %c0_19 = arith.constant 0 : index
    %c0_20 = arith.constant 0 : index
    %21 = vector.load %arg3[%c2_18, %c0_19, %c0_20] : memref<5x8x128xf32, #tpu.memory_space<vmem>>, vector<1x8x128xf32>
    %22 = vector.shape_cast %21 : vector<1x8x128xf32> to vector<8x128xf32>
    %c3_21 = arith.constant 3 : index
    %c0_22 = arith.constant 0 : index
    %c0_23 = arith.constant 0 : index
    %23 = vector.load %arg3[%c3_21, %c0_22, %c0_23] : memref<5x8x128xf32, #tpu.memory_space<vmem>>, vector<1x8x128xf32>
    %24 = vector.shape_cast %23 : vector<1x8x128xf32> to vector<8x128xf32>
    %c4_24 = arith.constant 4 : index
    %c0_25 = arith.constant 0 : index
    %c0_26 = arith.constant 0 : index
    %25 = vector.load %arg3[%c4_24, %c0_25, %c0_26] : memref<5x8x128xf32, #tpu.memory_space<vmem>>, vector<1x8x128xf32>
    %26 = vector.shape_cast %25 : vector<1x8x128xf32> to vector<8x128xf32>
    %cst_27 = arith.constant 5.000000e-01 : f32
    %27 = vector.broadcast %cst_27 : f32 to vector<8x128xf32>
    %28 = arith.mulf %16, %27 : vector<8x128xf32>
    %cst_28 = arith.constant 5.000000e-01 : f32
    %29 = vector.broadcast %cst_28 : f32 to vector<8x128xf32>
    %30 = arith.mulf %18, %29 : vector<8x128xf32>
    %cst_29 = arith.constant 5.000000e-01 : f32
    %31 = vector.broadcast %cst_29 : f32 to vector<8x128xf32>
    %32 = arith.mulf %24, %31 : vector<8x128xf32>
    %cst_30 = arith.constant 5.000000e-01 : f32
    %33 = vector.broadcast %cst_30 : f32 to vector<8x128xf32>
    %34 = arith.mulf %26, %33 : vector<8x128xf32>
    %35 = arith.addf %12, %28 : vector<8x128xf32>
    %36 = arith.addf %20, %32 : vector<8x128xf32>
    %37 = arith.minimumf %35, %36 : vector<8x128xf32>
    %38 = arith.subf %12, %28 : vector<8x128xf32>
    %39 = arith.subf %20, %32 : vector<8x128xf32>
    %40 = arith.maximumf %38, %39 : vector<8x128xf32>
    %41 = arith.subf %37, %40 : vector<8x128xf32>
    %cst_31 = arith.constant 0.000000e+00 : f32
    %42 = vector.broadcast %cst_31 : f32 to vector<8x128xf32>
    %43 = arith.maximumf %41, %42 : vector<8x128xf32>
    %44 = arith.addf %14, %30 : vector<8x128xf32>
    %45 = arith.addf %22, %34 : vector<8x128xf32>
    %46 = arith.minimumf %44, %45 : vector<8x128xf32>
    %47 = arith.subf %14, %30 : vector<8x128xf32>
    %48 = arith.subf %22, %34 : vector<8x128xf32>
    %49 = arith.maximumf %47, %48 : vector<8x128xf32>
    %50 = arith.subf %46, %49 : vector<8x128xf32>
    %cst_32 = arith.constant 0.000000e+00 : f32
    %51 = vector.broadcast %cst_32 : f32 to vector<8x128xf32>
    %52 = arith.maximumf %50, %51 : vector<8x128xf32>
    %53 = arith.mulf %43, %52 : vector<8x128xf32>
    %54 = arith.mulf %16, %18 : vector<8x128xf32>
    %55 = arith.mulf %24, %26 : vector<8x128xf32>
    %56 = arith.addf %54, %55 : vector<8x128xf32>
    %57 = arith.subf %56, %53 : vector<8x128xf32>
    %cst_33 = arith.constant 9.99999997E-7 : f32
    %58 = vector.broadcast %cst_33 : f32 to vector<8x128xf32>
    %59 = arith.maximumf %57, %58 : vector<8x128xf32>
    %60 = tpu.reciprocal %59 {approx = true} : vector<8x128xf32> -> vector<8x128xf32>
    %61 = arith.mulf %59, %60 : vector<8x128xf32>
    %cst_34 = arith.constant 2.000000e+00 : f32
    %62 = vector.broadcast %cst_34 : f32 to vector<8x128xf32>
    %63 = arith.subf %62, %61 : vector<8x128xf32>
    %64 = arith.mulf %60, %63 : vector<8x128xf32>
    %65 = arith.mulf %53, %64 : vector<8x128xf32>
    %66 = math.log %4 : vector<8x128xf32>
    %cst_35 = arith.constant -1.000000e+02 : f32
    %67 = vector.broadcast %cst_35 : f32 to vector<8x128xf32>
    %68 = arith.maximumf %66, %67 : vector<8x128xf32>
    %cst_36 = arith.constant 1.000000e+00 : f32
    %69 = vector.broadcast %cst_36 : f32 to vector<8x128xf32>
    %70 = arith.subf %69, %4 : vector<8x128xf32>
    %71 = math.log %70 : vector<8x128xf32>
    %cst_37 = arith.constant -1.000000e+02 : f32
    %72 = vector.broadcast %cst_37 : f32 to vector<8x128xf32>
    %73 = arith.maximumf %71, %72 : vector<8x128xf32>
    %74 = arith.mulf %6, %68 : vector<8x128xf32>
    %cst_38 = arith.constant 1.000000e+00 : f32
    %75 = vector.broadcast %cst_38 : f32 to vector<8x128xf32>
    %76 = arith.subf %75, %6 : vector<8x128xf32>
    %77 = arith.mulf %76, %73 : vector<8x128xf32>
    %78 = arith.addf %74, %77 : vector<8x128xf32>
    %cst_39 = arith.constant 0.000000e+00 : f32
    %79 = vector.broadcast %cst_39 : f32 to vector<8x128xf32>
    %80 = arith.subf %79, %78 : vector<8x128xf32>
    %cst_40 = arith.constant 0.000000e+00 : f32
    %81 = vector.broadcast %cst_40 : f32 to vector<8x128xf32>
    %cst_41 = arith.constant 1.000000e+00 : f32
    %82 = vector.broadcast %cst_41 : f32 to vector<8x128xf32>
    %83 = arith.subf %82, %65 : vector<8x128xf32>
    %84 = arith.select %8, %83, %81 : vector<8x128xi1>, vector<8x128xf32>
    %85 = vector.shape_cast %84 : vector<8x128xf32> to vector<1x8x128xf32>
    %cst_42 = arith.constant dense<0.000000e+00> : vector<8x128xf32>
    %86 = vector.multi_reduction <add>, %85, %cst_42 [0] : vector<1x8x128xf32> to vector<8x128xf32>
    %87 = arith.extui %8 : vector<8x128xi1> to vector<8x128xi32>
    %88 = arith.sitofp %87 : vector<8x128xi32> to vector<8x128xf32>
    %89 = vector.shape_cast %88 : vector<8x128xf32> to vector<1x8x128xf32>
    %cst_43 = arith.constant dense<0.000000e+00> : vector<8x128xf32>
    %90 = vector.multi_reduction <add>, %89, %cst_43 [0] : vector<1x8x128xf32> to vector<8x128xf32>
    %91 = arith.select %8, %80, %81 : vector<8x128xi1>, vector<8x128xf32>
    %92 = vector.shape_cast %91 : vector<8x128xf32> to vector<1x8x128xf32>
    %cst_44 = arith.constant dense<0.000000e+00> : vector<8x128xf32>
    %93 = vector.multi_reduction <add>, %92, %cst_44 [0] : vector<1x8x128xf32> to vector<8x128xf32>
    %94 = arith.extui %10 : vector<8x128xi1> to vector<8x128xi32>
    %95 = arith.sitofp %94 : vector<8x128xi32> to vector<8x128xf32>
    %96 = vector.shape_cast %95 : vector<8x128xf32> to vector<1x8x128xf32>
    %cst_45 = arith.constant dense<0.000000e+00> : vector<8x128xf32>
    %97 = vector.multi_reduction <add>, %96, %cst_45 [0] : vector<1x8x128xf32> to vector<8x128xf32>
    %98 = arith.select %10, %80, %81 : vector<8x128xi1>, vector<8x128xf32>
    %99 = vector.shape_cast %98 : vector<8x128xf32> to vector<1x8x128xf32>
    %cst_46 = arith.constant dense<0.000000e+00> : vector<8x128xf32>
    %100 = vector.multi_reduction <add>, %99, %cst_46 [0] : vector<1x8x128xf32> to vector<8x128xf32>
    %101 = tpu.concatenate %86, %90, %93, %97, %100 in 0 : vector<8x128xf32>, vector<8x128xf32>, vector<8x128xf32>, vector<8x128xf32>, vector<8x128xf32> -> vector<40x128xf32>
    %c0_47 = arith.constant 0 : index
    %c0_48 = arith.constant 0 : index
    %c0_49 = arith.constant 0 : index
    %102 = vector.load %arg4[%c0_47, %c0_48, %c0_49] : memref<1x40x128xf32, #tpu.memory_space<vmem>>, vector<1x40x128xf32>
    %103 = vector.shape_cast %102 : vector<1x40x128xf32> to vector<40x128xf32>
    %104 = arith.addf %103, %101 : vector<40x128xf32>
    %c0_50 = arith.constant 0 : index
    %c0_51 = arith.constant 0 : index
    %c0_52 = arith.constant 0 : index
    %105 = vector.load %arg4[%c0_50, %c0_51, %c0_52] : memref<1x40x128xf32, #tpu.memory_space<vmem>>, vector<1x40x128xf32>
    %106 = vector.shape_cast %105 : vector<1x40x128xf32> to vector<40x128xf32>
    %107 = vector.shape_cast %104 : vector<40x128xf32> to vector<1x40x128xf32>
    tpu.vector_store %arg4[%c0_50, %c0_51, %c0_52], %107 {strides = array<i32>} : memref<1x40x128xf32, #tpu.memory_space<vmem>>, vector<1x40x128xf32>,
    return
  }
  func.func @transform_0(%arg0: i32, %arg1: i32) -> (i32, i32, i32) {
    %c1_i32 = arith.constant 1 : i32
    %0 = arith.muli %arg0, %c1_i32 : i32
    %1 = arith.addi %0, %arg1 : i32
    %c0_i32 = arith.constant 0 : i32
    %c0_i32_0 = arith.constant 0 : i32
    %c0_i32_1 = arith.constant 0 : i32
    return %c0_i32, %1, %c0_i32_0 : i32, i32, i32
  }
  func.func @transform_1(%arg0: i32, %arg1: i32) -> (i32, i32, i32) {
    %c1_i32 = arith.constant 1 : i32
    %0 = arith.muli %arg0, %c1_i32 : i32
    %1 = arith.addi %0, %arg1 : i32
    %c0_i32 = arith.constant 0 : i32
    %c0_i32_0 = arith.constant 0 : i32
    %c0_i32_1 = arith.constant 0 : i32
    return %c0_i32, %1, %c0_i32_0 : i32, i32, i32
  }
  func.func @transform_2(%arg0: i32, %arg1: i32) -> (i32, i32, i32) {
    %c0_i32 = arith.constant 0 : i32
    %c0_i32_0 = arith.constant 0 : i32
    %c0_i32_1 = arith.constant 0 : i32
    return %arg0, %c0_i32, %c0_i32_0 : i32, i32, i32
  }
}

</mosaic_0001>

<llo_original>
// kernel: tpu_custom_call.1
$region0: #{tpu_custom_call.1}
  #allocation0 [shape = 'u32[]', space=smem, size = 0x4, offset = 0x4, fixed_abs, tag = 'smem constant byte address 0x4 - core index']
  #allocation1 [shape = 'u32[144,128]{1,0:T(1,128)}', space=vmem, size = 0x12000, scoped, tag = 'internal scratch']
  %s0 = inlined_call_operand.hbm [shape: f32[5,8,128], index: 0, kind: input, shape index: {}]
  %s1 = inlined_call_operand.hbm [shape: f32[5,8,128], index: 1, kind: input, shape index: {}]
  %s2 = inlined_call_operand.hbm [shape: f32[1,40,128], index: 2, kind: output, shape index: {}]
  %s3 = sld [smem:[#allocation0]]
  $region30: #{tpu_custom_call.1} parent=0
    _
  %s5 = ssub.s32 1, %s3
  %s6 = scalar_select 0, %s5, %s3
  $region1: #{tpu_custom_call.1} parent=0
    #allocation2 [shape = 'u8[20480]{0}', space=vmem, size = 0x5000, scoped, tag = 'input window, operand 0, single buffered']
    #allocation3 [shape = 's32[1]{0}', space=sflag, size = 0x4, scoped, tag = 'scoped memory for tpu_custom_call.1']
    #allocation4 [shape = 's32[1]{0}', space=sflag, size = 0x4, scoped, tag = 'scoped memory for tpu_custom_call.1']
    #allocation5 [shape = 'u8[20480]{0}', space=vmem, size = 0x5000, scoped, tag = 'input window, operand 1, single buffered']
    #allocation6 [shape = 's32[1]{0}', space=sflag, size = 0x4, scoped, tag = 'scoped memory for tpu_custom_call.1']
    #allocation7 [shape = 'u8[20480]{0}', space=vmem, size = 0x5000, scoped, tag = 'output window, operand 0, single buffered']
    %7 = vsyncpa [#allocation3], 0
    %8 = vsyncpa [#allocation6], 0
    %9 = vsyncpa [#allocation4], 0
    // Predicated region
    $region2: #{tpu_custom_call.1} parent=1 // pred_check
      _
    $region3: #{tpu_custom_call.1} parent=1 // pred_check_branch
      %11 = sbr.rel (0) target = $region5
    $region4: #{tpu_custom_call.1} parent=1 // pred_region
      %s12 = sadd.s32 0, 0
      %s14 = ssub.s32 640, 640
      %15 = vsyncadd [#allocation3], %s14
      %s16 = smul.addr %s12, 128
      %s17 = scalar_lea.hbm %s0, %s16
      %s18 = sshll.u32 [#allocation2], 4
      %s19 = int_to_ptr.vmem [resolvable:$true] %s18
      %24 = dma.hbm_to_vmem [thread:$0]  %s17, 640, %s19, [#allocation3], 128, 128, 8
    $region5: #{tpu_custom_call.1} parent=1 // pred_fallthru
      _
    // Predicated region
    $region6: #{tpu_custom_call.1} parent=1 // pred_check
      _
    $region7: #{tpu_custom_call.1} parent=1 // pred_check_branch
      %26 = sbr.rel (0) target = $region9
    $region8: #{tpu_custom_call.1} parent=1 // pred_region
      %s27 = sadd.s32 0, 0
      %s29 = ssub.s32 640, 640
      %30 = vsyncadd [#allocation6], %s29
      %s31 = smul.addr %s27, 128
      %s32 = scalar_lea.hbm %s1, %s31
      %s33 = sshll.u32 [#allocation5], 4
      %s34 = int_to_ptr.vmem [resolvable:$true] %s33
      %39 = dma.hbm_to_vmem [thread:$0]  %s32, 640, %s34, [#allocation6], 128, 128, 8
    $region9: #{tpu_custom_call.1} parent=1 // pred_fallthru
      _
    // Predicated region
    $region10: #{tpu_custom_call.1} parent=1 // pred_check
      _
    $region11: #{tpu_custom_call.1} parent=1 // pred_check_branch
      %41 = sbr.rel (0) target = $region13
    $region12: #{tpu_custom_call.1} parent=1 // pred_region
      %42 = dma.done [#allocation3], 640
    $region13: #{tpu_custom_call.1} parent=1 // pred_fallthru
      _
    // Predicated region
    $region14: #{tpu_custom_call.1} parent=1 // pred_check
      _
    $region15: #{tpu_custom_call.1} parent=1 // pred_check_branch
      %44 = sbr.rel (0) target = $region17
    $region16: #{tpu_custom_call.1} parent=1 // pred_region
      %45 = dma.done [#allocation6], 640
    $region17: #{tpu_custom_call.1} parent=1 // pred_fallthru
      _
    %s46 = sadd.s32 0, 0
    %s47 = sadd.s32 0, 0
    %p48 = scmp.eq.s32.totalorder 0, 0
    // Predicated region
    $region18: #{tpu_custom_call.1} parent=1 // pred_check
      %p49 = pneg %p48
    $region19: #{tpu_custom_call.1} parent=1 // pred_check_branch
      %51 = sbr.rel (%p49) target = $region21
    $region20: #{tpu_custom_call.1} parent=1 // pred_region
      %52 = vst [vmem:[#allocation7] sm:$0xff] 0.0
      %53 = vst [vmem:[#allocation7 + $0x8] sm:$0xff] 0.0
      %54 = vst [vmem:[#allocation7 + $0x10] sm:$0xff] 0.0
      %55 = vst [vmem:[#allocation7 + $0x18] sm:$0xff] 0.0
      %56 = vst [vmem:[#allocation7 + $0x20] sm:$0xff] 0.0
    $region21: #{tpu_custom_call.1} parent=1 // pred_fallthru
      _
    %v57 = vld [vmem:[#allocation2] sm:$0xff]
    %v58 = vld [vmem:[#allocation5] sm:$0xff]
    %vm59 = vcmp.gt.f32.partialorder %v58, 0.0
    %vm60 = vcmp.eq.f32.partialorder %v58, 0.0
    %s61 = scalar_lea.vmem [#allocation2], 8
    %v62 = vld [vmem:[%s61] sm:$0xff]
    %s63 = scalar_lea.vmem [#allocation2], 16
    %v64 = vld [vmem:[%s63] sm:$0xff]
    %s65 = scalar_lea.vmem [#allocation2], 24
    %v66 = vld [vmem:[%s65] sm:$0xff]
    %s67 = scalar_lea.vmem [#allocation2], 32
    %v68 = vld [vmem:[%s67] sm:$0xff]
    %s69 = scalar_lea.vmem [#allocation5], 8
    %v70 = vld [vmem:[%s69] sm:$0xff]
    %s71 = scalar_lea.vmem [#allocation5], 16
    %v72 = vld [vmem:[%s71] sm:$0xff]
    %s73 = scalar_lea.vmem [#allocation5], 24
    %v74 = vld [vmem:[%s73] sm:$0xff]
    %s75 = scalar_lea.vmem [#allocation5], 32
    %v76 = vld [vmem:[%s75] sm:$0xff]
    %v77 = vmul.f32 %v66, 0.5
    %v78 = vmul.f32 %v68, 0.5
    %v79 = vmul.f32 %v74, 0.5
    %v80 = vmul.f32 %v76, 0.5
    %v81 = vadd.f32 %v62, %v77
    %v82 = vadd.f32 %v70, %v79
    %v83 = vmin.f32 %v81, %v82
    %v84 = vsub.f32 %v62, %v77
    %v85 = vsub.f32 %v70, %v79
    %v86 = vmax.f32 %v84, %v85
    %v87 = vsub.f32 %v83, %v86
    %v88 = vmax.f32 %v87, 0.0
    %v89 = vadd.f32 %v64, %v78
    %v90 = vadd.f32 %v72, %v80
    %v91 = vmin.f32 %v89, %v90
    %v92 = vsub.f32 %v64, %v78
    %v93 = vsub.f32 %v72, %v80
    %v94 = vmax.f32 %v92, %v93
    %v95 = vsub.f32 %v91, %v94
    %v96 = vmax.f32 %v95, 0.0
    %v97 = vmul.f32 %v88, %v96
    %v98 = vmul.f32 %v66, %v68
    %v99 = vmul.f32 %v74, %v76
    %v100 = vadd.f32 %v98, %v99
    %v101 = vsub.f32 %v100, %v97
    %v102 = vmax.f32 %v101, 1e-06
    %v103 = vrcp.pop %v102
    %v104 = vmul.f32 %v102, %v103
    %v105 = vsub.f32 2.0, %v104
    %v106 = vmul.f32 %v103, %v105
    %v107 = vmul.f32 %v97, %v106
    %v108 = vlog2.pop %v57
    %v109 = vmul.f32 %v108, 0.6931472
    %v110 = vmax.f32 %v109, -100.0
    %v111 = vsub.f32 1.0, %v57
    %v112 = vlog2.pop %v111
    %v113 = vmul.f32 %v112, 0.6931472
    %v114 = vmax.f32 %v113, -100.0
    %v115 = vmul.f32 %v58, %v110
    %v116 = vsub.f32 1.0, %v58
    %v117 = vmul.f32 %v116, %v114
    %v118 = vadd.f32 %v115, %v117
    %v119 = vsub.f32 0.0, %v118
    %v120 = vsub.f32 1.0, %v107
    %v121 = vsel %vm59, %v120, 0.0
    %v122 = vadd.f32 %v121, 0.0
    %v123 = vsel %vm59, 1, 0
    %v124 = vcvt.s32.f32 %v123
    %v125 = vadd.f32 %v124, 0.0
    %v126 = vsel %vm59, %v119, 0.0
    %v127 = vadd.f32 %v126, 0.0
    %v128 = vsel %vm60, 1, 0
    %v129 = vcvt.s32.f32 %v128
    %v130 = vadd.f32 %v129, 0.0
    %v131 = vsel %vm60, %v119, 0.0
    %v132 = vadd.f32 %v131, 0.0
    %v133 = vld [vmem:[#allocation7] sm:$0xff]
    %v134 = vld [vmem:[#allocation7 + $0x8] sm:$0xff]
    %v135 = vld [vmem:[#allocation7 + $0x10] sm:$0xff]
    %v136 = vld [vmem:[#allocation7 + $0x18] sm:$0xff]
    %v137 = vld [vmem:[#allocation7 + $0x20] sm:$0xff]
    %v138 = vadd.f32 %v133, %v122
    %v139 = vadd.f32 %v134, %v125
    %v140 = vadd.f32 %v135, %v127
    %v141 = vadd.f32 %v136, %v130
    %v142 = vadd.f32 %v137, %v132
    %143 = vst [vmem:[#allocation7] sm:$0xff] %v138
    %144 = vst [vmem:[#allocation7 + $0x8] sm:$0xff] %v139
    %145 = vst [vmem:[#allocation7 + $0x10] sm:$0xff] %v140
    %146 = vst [vmem:[#allocation7 + $0x18] sm:$0xff] %v141
    %147 = vst [vmem:[#allocation7 + $0x20] sm:$0xff] %v142
    // Predicated region
    $region22: #{tpu_custom_call.1} parent=1 // pred_check
      _
    $region23: #{tpu_custom_call.1} parent=1 // pred_check_branch
      %149 = sbr.rel (0) target = $region25
    $region24: #{tpu_custom_call.1} parent=1 // pred_region
      %s151 = ssub.s32 640, 640
      %152 = vsyncadd [#allocation4], %s151
      %s153 = sshll.u32 [#allocation7], 4
      %s154 = int_to_ptr.vmem [resolvable:$true] %s153
      %159 = dma.vmem_to_hbm [thread:$0]  %s154, 640, %s2, [#allocation4], 128, 128, 8
    $region25: #{tpu_custom_call.1} parent=1 // pred_fallthru
      _
    // Predicated region
    $region26: #{tpu_custom_call.1} parent=1 // pred_check
      _
    $region27: #{tpu_custom_call.1} parent=1 // pred_check_branch
      %161 = sbr.rel (0) target = $region29
    $region28: #{tpu_custom_call.1} parent=1 // pred_region
      %162 = dma.done [#allocation4], 640
    $region29: #{tpu_custom_call.1} parent=1 // pred_fallthru
      _
    %163 = vsyncpa [#allocation3], 1
    %164 = vsyncpa [#allocation6], 1
    %165 = vsyncpa [#allocation4], 1

</llo_original>
